<compile_context>
chip_gen: v5e
topology: v5e:2x2
jax: 0.10.0
libtpu: 0.0.40
codegen_flags: <defaults>
</compile_context>

<pallas_src>
import functools

import jax
import jax.numpy as jnp
from jax import lax
from jax.experimental import pallas as pl
from jax.experimental.pallas import tpu as pltpu

_LANE = 128
_MAX_GROUPS = 64                       # cap on unrolled 128-lane column groups/tile
_MAX_BLOCK_COLS = _MAX_GROUPS * _LANE  # 8192


def _cdiv(a, b):
    return -(-a // b)


def _round_up(x, m):
    return _cdiv(x, m) * m


def _round_down(x, m):
    return (x // m) * m


# ---------------------------------------------------------------------------
# Kernels
# ---------------------------------------------------------------------------
def _ce_loss_oneshot_kernel(logits_ref, label_ref, out_ref, *,
                            n_rows, n_cols, block_rows):
    """Single class tile per batch tile (block_cols == n_cols, not 128-aligned)."""
    i = pl.program_id(0)
    logits = logits_ref[...].astype(jnp.float32)
    label = label_ref[...].astype(jnp.float32)

    m = jnp.max(logits, axis=1, keepdims=True)
    lse = m + jnp.log(jnp.sum(jnp.exp(logits - m), axis=1, keepdims=True))
    a = jnp.sum(label * logits, axis=1, keepdims=True)
    b = jnp.sum(logits, axis=1, keepdims=True)
    w = jnp.sum(label, axis=1, keepdims=True)
    # sum_c (label/W + 1e-10)*(logit - lse) == A/W - lse + 1e-10*(B - C*lse)
    per_row = -(a / w - lse + jnp.float32(1e-10) * (b - jnp.float32(n_cols) * lse))
    if n_rows % block_rows != 0:
        row = i * block_rows + lax.broadcasted_iota(jnp.int32, per_row.shape, 0)
        per_row = jnp.where(row < n_rows, per_row, 0.0)
    out_ref[...] = per_row


def _ce_loss_kernel(logits_ref, label_ref, out_ref,
                    m_ref, l_ref, a_ref, b_ref, w_ref,
                    *, n_rows, n_cols, block_rows, block_cols):
    """Streaming / lane-folded kernel. Requires block_cols % 128 == 0."""
    i = pl.program_id(0)                 # batch tile ("parallel")
    c = pl.program_id(1)                 # class tile ("arbitrary", innermost)
    num_c = pl.num_programs(1)
    n_groups = block_cols // _LANE

    @pl.when(c == 0)
    def _init():
        m_ref[...] = jnp.full_like(m_ref, -jnp.inf)
        l_ref[...] = jnp.zeros_like(l_ref)
        a_ref[...] = jnp.zeros_like(a_ref)
        b_ref[...] = jnp.zeros_like(b_ref)
        w_ref[...] = jnp.zeros_like(w_ref)

    def _accumulate(masked):
        logits = logits_ref[...].astype(jnp.float32)
        label = label_ref[...].astype(jnp.float32)
        if masked:
            # Only emitted for the last class tile when n_cols % block_cols != 0.
            col = c * block_cols + lax.broadcasted_iota(
                jnp.int32, (block_rows, block_cols), 1)
            valid = col < n_cols
            label = jnp.where(valid, label, 0.0)
            logits_lse = jnp.where(valid, logits, -jnp.inf)   # exp() contributes 0
            logits_val = jnp.where(valid, logits, 0.0)        # plain sums unaffected
        else:
            logits_lse = logits
            logits_val = logits

        def grp(x, g):                   # lane-aligned static slice: pure vreg select
            return x[:, g * _LANE:(g + 1) * _LANE]

        # Fold the tile's 128-lane column groups: pure VPU work, no XLU per tile.
        gmax = grp(logits_lse, 0)
        for g in range(1, n_groups):
            gmax = jnp.maximum(gmax, grp(logits_lse, g))
        m_prev = m_ref[...]
        m_new = jnp.maximum(m_prev, gmax)
        alpha = jnp.exp(m_prev - m_new)

        esum = jnp.exp(grp(logits_lse, 0) - m_new)
        a_add = grp(label, 0) * grp(logits_val, 0)
        b_add = grp(logits_val, 0)
        w_add = grp(label, 0)
        for g in range(1, n_groups):
            esum = esum + jnp.exp(grp(logits_lse, g) - m_new)
            a_add = a_add + grp(label, g) * grp(logits_val, g)
            b_add = b_add + grp(logits_val, g)
            w_add = w_add + grp(label, g)

        l_ref[...] = alpha * l_ref[...] + esum
        m_ref[...] = m_new
        a_ref[...] = a_ref[...] + a_add
        b_ref[...] = b_ref[...] + b_add
        w_ref[...] = w_ref[...] + w_add

    if n_cols % block_cols == 0:
        _accumulate(masked=False)        # no per-tile masking cost anywhere
    else:
        @pl.when(c < num_c - 1)
        def _unmasked():
            _accumulate(masked=False)

        @pl.when(c == num_c - 1)
        def _masked():
            _accumulate(masked=True)

    @pl.when(c == num_c - 1)
    def _finalize():
        # Single XLU cross-lane pass per batch tile.
        m_lane = m_ref[...]
        m_row = jnp.max(m_lane, axis=1, keepdims=True)
        l_row = jnp.sum(l_ref[...] * jnp.exp(m_lane - m_row), axis=1, keepdims=True)
        lse = m_row + jnp.log(l_row)
        a_row = jnp.sum(a_ref[...], axis=1, keepdims=True)
        b_row = jnp.sum(b_ref[...], axis=1, keepdims=True)
        w_row = jnp.sum(w_ref[...], axis=1, keepdims=True)
        per_row = -(a_row / w_row - lse
                    + jnp.float32(1e-10) * (b_row - jnp.float32(n_cols) * lse))
        if n_rows % block_rows != 0:
            # Ragged batch tile: zero padded rows so wrapper's sum / true-N is exact.
            row = i * block_rows + lax.broadcasted_iota(jnp.int32, per_row.shape, 0)
            per_row = jnp.where(row < n_rows, per_row, 0.0)
        out_ref[...] = per_row


# ---------------------------------------------------------------------------
# Tile selection (generation-aware)
# ---------------------------------------------------------------------------
def _choose_config(n_rows, n_cols, logits_dtype, label_dtype):
    lbytes = jnp.dtype(logits_dtype).itemsize
    ybytes = jnp.dtype(label_dtype).itemsize
    pair_bytes = lbytes + ybytes
    # Sublane packing: 32-bit -> 8 rows/vreg, 16-bit -> 16, 8-bit -> 32.
    row_align = max(8 * (4 // lbytes), 8 * (4 // ybytes))

    try:
        vmem_cap = int(pltpu.get_tpu_info().vmem_capacity_bytes)
    except Exception:
        vmem_cap = 64 * 1024 * 1024          # conservative fallback
    tile_budget = max(24 * 1024 * 1024, (vmem_cap * 7) // 16)  # 56 MiB@128, 28 MiB@64
    vmem_limit = max(32 * 1024 * 1024, (vmem_cap * 3) // 4)    # 96 MiB@128, 48 MiB@64
    # v7x (64 MiB / TensorCore) has two cores fed via the "parallel" batch axis.
    min_batch_tiles = 8 if vmem_cap < 100 * 1024 * 1024 else 1

    scratch_row_bytes = 5 * _LANE * 4        # five (rows, 128) f32 accumulators
    target_pair_bytes = 8 * 1024 * 1024      # >= ~4 MiB per input tile per grid step

    def _cap_rows(rows):
        if min_batch_tiles > 1 and n_rows > row_align:
            cap = max(row_align, _round_up(_cdiv(n_rows, min_batch_tiles), row_align))
            rows = min(rows, cap)
        rows = max(row_align, _round_down(rows, row_align))
        return n_rows if rows >= n_rows else rows

    # ---- full-C path: whole class axis resident per grid step ----
    per_row_full = 2 * n_cols * pair_bytes + scratch_row_bytes
    max_rows_full = tile_budget // per_row_full
    if n_cols <= _MAX_BLOCK_COLS and max_rows_full >= min(n_rows, row_align):
        rows_target = _cdiv(target_pair_bytes, n_cols * pair_bytes)
        block_rows = _cap_rows(min(int(max_rows_full), max(rows_target, row_align)))
        return block_rows, n_cols, vmem_limit

    # ---- streaming path (vocab-scale C): tile the class axis ----
    block_rows = _cap_rows(256)
    cols_budget = (tile_budget - block_rows * scratch_row_bytes) // (
        2 * block_rows * pair_bytes)
    block_cols = max(_LANE,
                     _round_down(min(cols_budget, _MAX_BLOCK_COLS, n_cols), _LANE))
    # Prefer a block_cols that evenly divides n_cols (-> no ragged masking at all),
    # as long as it is not much smaller than the budget-maximal tile.
    if n_cols % block_cols != 0:
        lo = max(_LANE, _round_down(block_cols // 2, _LANE))
        for cand in range(block_cols - _LANE, lo - 1, -_LANE):
            if cand > 0 and n_cols % cand == 0:
                block_cols = cand
                break
    return block_rows, block_cols, vmem_limit


# ---------------------------------------------------------------------------
# Public wrapper
# ---------------------------------------------------------------------------
def cross_entropy_loss(logits, label, *, block_rows=None, block_cols=None):
    """Pallas TPU implementation of the PyTorch CrossEntropyLoss.forward (scalar f32)."""
    assert logits.ndim == 2 and logits.shape == label.shape
    n_rows, n_cols = logits.shape
    auto_rows, auto_cols, vmem_limit = _choose_config(
        n_rows, n_cols, logits.dtype, label.dtype)
    block_rows = auto_rows if block_rows is None else int(block_rows)
    block_cols = auto_cols if block_cols is None else int(block_cols)
    block_rows = min(block_rows, n_rows)
    block_cols = min(block_cols, n_cols)
    if block_cols % _LANE != 0 and block_cols != n_cols:
        raise ValueError("block_cols must be a multiple of 128 or equal n_cols")

    num_i = _cdiv(n_rows, block_rows)
    num_c = _cdiv(n_cols, block_cols)
    padded_rows = num_i * block_rows
    pair_bytes = jnp.dtype(logits.dtype).itemsize + jnp.dtype(label.dtype).itemsize

    cost = pl.CostEstimate(
        flops=int(6 * n_rows * n_cols),
        transcendentals=int(n_rows * n_cols),
        bytes_accessed=int(n_rows * n_cols * pair_bytes + padded_rows * 4),
    )

    if block_cols % _LANE != 0:
        # Small / odd class count: single class tile, direct per-row reductions.
        kernel = functools.partial(
            _ce_loss_oneshot_kernel,
            n_rows=n_rows, n_cols=n_cols, block_rows=block_rows)
        per_row = pl.pallas_call(
            kernel,
            out_shape=jax.ShapeDtypeStruct((padded_rows, 1), jnp.float32),
            grid_spec=pltpu.PrefetchScalarGridSpec(
                num_scalar_prefetch=0,
                grid=(num_i,),
                in_specs=[
                    pl.BlockSpec((block_rows, block_cols), lambda i: (i, 0)),
                    pl.BlockSpec((block_rows, block_cols), lambda i: (i, 0)),
                ],
                out_specs=pl.BlockSpec((block_rows, 1), lambda i: (i, 0)),
            ),
            compiler_params=pltpu.CompilerParams(
                dimension_semantics=("parallel",),
                vmem_limit_bytes=int(vmem_limit),
            ),
            cost_estimate=cost,
        )(logits, label)
    else:
        kernel = functools.partial(
            _ce_loss_kernel,
            n_rows=n_rows, n_cols=n_cols,
            block_rows=block_rows, block_cols=block_cols)
        per_row = pl.pallas_call(
            kernel,
            out_shape=jax.ShapeDtypeStruct((padded_rows, 1), jnp.float32),
            grid_spec=pltpu.PrefetchScalarGridSpec(
                num_scalar_prefetch=0,
                grid=(num_i, num_c),
                in_specs=[
                    pl.BlockSpec((block_rows, block_cols), lambda i, c: (i, c)),
                    pl.BlockSpec((block_rows, block_cols), lambda i, c: (i, c)),
                ],
                out_specs=pl.BlockSpec((block_rows, 1), lambda i, c: (i, 0)),
                scratch_shapes=[pltpu.VMEM((block_rows, _LANE), jnp.float32)
                                for _ in range(5)],
            ),
            compiler_params=pltpu.CompilerParams(
                dimension_semantics=("parallel", "arbitrary"),
                vmem_limit_bytes=int(vmem_limit),
            ),
            cost_estimate=cost,
        )(logits, label)

    # Batch mean over the true N (padded rows were written as exact zeros).
    return jnp.sum(per_row) / jnp.float32(n_rows)


def _reference(logits, label):
    # pure-JAX reference (matches the PyTorch forward).
    # NOTE: rows with sum(label)==0 give NaN here and in the kernel (parity).
    lab = label / jnp.sum(label, axis=1, keepdims=True) + 1e-10
    log_sm = jax.nn.log_softmax(logits, axis=1)
    return -jnp.mean(jnp.sum(lab * log_sm, axis=1), axis=0)


if __name__ == "__main__":
    key = jax.random.PRNGKey(0)
    k1, k2, k3, k4, k5, k6 = jax.random.split(key, 6)

    # --- small shape consistent with the module: batch=8, classes=32, f32 ---
    n1, c1 = 8, 32
    logits1 = jax.random.normal(k1, (n1, c1), dtype=jnp.float32)
    label1 = jax.random.uniform(k2, (n1, c1), dtype=jnp.float32, minval=0.0, maxval=1.0)
    loss1 = cross_entropy_loss(logits1, label1)
    jax.block_until_ready(loss1)
    ref1 = _reference(logits1, label1)
    assert jnp.allclose(loss1, ref1, atol=1e-5, rtol=1e-5), (loss1, ref1)

    # --- streaming kernel: ragged batch AND ragged (last-tile-masked) class tiles ---
    n2, c2 = 20, 160
    logits2 = jax.random.normal(k3, (n2, c2), dtype=jnp.float32)
    label2 = jax.random.uniform(k4, (n2, c2), dtype=jnp.float32, minval=0.0, maxval=1.0)
    loss2 = cross_entropy_loss(logits2, label2, block_rows=8, block_cols=128)
    jax.block_until_ready(loss2)
    ref2 = _reference(logits2, label2)
    assert jnp.allclose(loss2, ref2, atol=1e-5, rtol=1e-5), (loss2, ref2)

    # --- streaming kernel: evenly-dividing class tiles (no masking path emitted) ---
    n3, c3 = 16, 256
    logits3 = jax.random.normal(k5, (n3, c3), dtype=jnp.float32)
    label3 = jax.random.uniform(k6, (n3, c3), dtype=jnp.float32, minval=0.0, maxval=1.0)
    ref3 = _reference(logits3, label3)
    loss3 = cross_entropy_loss(logits3, label3, block_rows=8, block_cols=128)
    jax.block_until_ready(loss3)
    assert jnp.allclose(loss3, ref3, atol=1e-5, rtol=1e-5), (loss3, ref3)
    # auto config: full-C lane-folded path (C multiple of 128, single class tile)
    loss3b = cross_entropy_loss(logits3, label3)
    jax.block_until_ready(loss3b)
    assert jnp.allclose(loss3b, ref3, atol=1e-5, rtol=1e-5), (loss3b, ref3)

    # --- bf16 inputs stay bf16 on the HBM wire; math is f32 inside the kernel ---
    logits4 = logits2.astype(jnp.bfloat16)
    label4 = label2.astype(jnp.bfloat16)
    loss4 = cross_entropy_loss(logits4, label4)
    jax.block_until_ready(loss4)
    ref4 = _reference(logits4.astype(jnp.float32), label4.astype(jnp.float32))
    assert jnp.allclose(loss4, ref4, atol=1e-4, rtol=1e-4), (loss4, ref4)

    print("KERNEL_OK")
</pallas_src>

<mosaic_0001>
module attributes {stable_mosaic.version = 11 : i64} {
  func.func @_ce_loss_oneshot_kernel(%arg0: i32, %arg1: memref<8x32xf32, #tpu.memory_space<vmem>>, %arg2: memref<8x32xf32, #tpu.memory_space<vmem>>, %arg3: memref<8x1xf32, #tpu.memory_space<vmem>>) attributes {dimension_semantics = [#tpu.dimension_semantics<parallel>], iteration_bounds = array<i64: 1>, scalar_prefetch = 0 : i64, scratch_operands = 0 : i64, tpu.core_type = #tpu.core_type<tc>, window_params = [{transform_indices = @transform_0, window_bounds = array<i64: 8, 32>}, {transform_indices = @transform_1, window_bounds = array<i64: 8, 32>}, {transform_indices = @transform_2, window_bounds = array<i64: 8, 1>}]} {
    %c0 = arith.constant 0 : index
    %c0_0 = arith.constant 0 : index
    %0 = vector.load %arg1[%c0, %c0_0] : memref<8x32xf32, #tpu.memory_space<vmem>>, vector<8x32xf32>
    %c0_1 = arith.constant 0 : index
    %c0_2 = arith.constant 0 : index
    %1 = vector.load %arg2[%c0_1, %c0_2] : memref<8x32xf32, #tpu.memory_space<vmem>>, vector<8x32xf32>
    %cst = arith.constant dense<0xFF800000> : vector<8xf32>
    %2 = vector.multi_reduction <maximumf>, %0, %cst [1] : vector<8x32xf32> to vector<8xf32>
    %3 = vector.shape_cast %2 : vector<8xf32> to vector<8x1xf32>
    %4 = vector.broadcast %3 : vector<8x1xf32> to vector<8x32xf32>
    %5 = arith.subf %0, %4 : vector<8x32xf32>
    %6 = math.exp %5 : vector<8x32xf32>
    %cst_3 = arith.constant dense<0.000000e+00> : vector<8xf32>
    %7 = vector.multi_reduction <add>, %6, %cst_3 [1] : vector<8x32xf32> to vector<8xf32>
    %8 = vector.shape_cast %7 : vector<8xf32> to vector<8x1xf32>
    %9 = math.log %8 : vector<8x1xf32>
    %10 = arith.addf %3, %9 : vector<8x1xf32>
    %11 = arith.mulf %1, %0 : vector<8x32xf32>
    %cst_4 = arith.constant dense<0.000000e+00> : vector<8xf32>
    %12 = vector.multi_reduction <add>, %11, %cst_4 [1] : vector<8x32xf32> to vector<8xf32>
    %13 = vector.shape_cast %12 : vector<8xf32> to vector<8x1xf32>
    %cst_5 = arith.constant dense<0.000000e+00> : vector<8xf32>
    %14 = vector.multi_reduction <add>, %0, %cst_5 [1] : vector<8x32xf32> to vector<8xf32>
    %15 = vector.shape_cast %14 : vector<8xf32> to vector<8x1xf32>
    %cst_6 = arith.constant dense<0.000000e+00> : vector<8xf32>
    %16 = vector.multi_reduction <add>, %1, %cst_6 [1] : vector<8x32xf32> to vector<8xf32>
    %17 = vector.shape_cast %16 : vector<8xf32> to vector<8x1xf32>
    %18 = arith.divf %13, %17 : vector<8x1xf32>
    %19 = arith.subf %18, %10 : vector<8x1xf32>
    %cst_7 = arith.constant 3.200000e+01 : f32
    %20 = vector.broadcast %cst_7 : f32 to vector<8x1xf32>
    %21 = arith.mulf %20, %10 : vector<8x1xf32>
    %22 = arith.subf %15, %21 : vector<8x1xf32>
    %cst_8 = arith.constant 1.000000e-10 : f32
    %23 = vector.broadcast %cst_8 : f32 to vector<8x1xf32>
    %24 = arith.mulf %23, %22 : vector<8x1xf32>
    %25 = arith.addf %19, %24 : vector<8x1xf32>
    %cst_9 = arith.constant 0.000000e+00 : f32
    %26 = vector.broadcast %cst_9 : f32 to vector<8x1xf32>
    %27 = arith.subf %26, %25 : vector<8x1xf32>
    %c0_10 = arith.constant 0 : index
    %c0_11 = arith.constant 0 : index
    %28 = vector.load %arg3[%c0_10, %c0_11] : memref<8x1xf32, #tpu.memory_space<vmem>>, vector<8x1xf32>
    tpu.vector_store %arg3[%c0_10, %c0_11], %27 {strides = array<i32>} : memref<8x1xf32, #tpu.memory_space<vmem>>, vector<8x1xf32>,
    return
  }
  func.func @transform_0(%arg0: i32) -> (i32, i32) {
    %c0_i32 = arith.constant 0 : i32
    %c0_i32_0 = arith.constant 0 : i32
    return %arg0, %c0_i32 : i32, i32
  }
  func.func @transform_1(%arg0: i32) -> (i32, i32) {
    %c0_i32 = arith.constant 0 : i32
    %c0_i32_0 = arith.constant 0 : i32
    return %arg0, %c0_i32 : i32, i32
  }
  func.func @transform_2(%arg0: i32) -> (i32, i32) {
    %c0_i32 = arith.constant 0 : i32
    %c0_i32_0 = arith.constant 0 : i32
    return %arg0, %c0_i32 : i32, i32
  }
}

</mosaic_0001>

<llo_original>
// kernel: tpu_custom_call.1
$region0: #{tpu_custom_call.1}
  #allocation0 [shape = 'u32[]', space=smem, size = 0x4, offset = 0x4, fixed_abs, tag = 'smem constant byte address 0x4 - core index']
  #allocation1 [shape = 'u32[72,128]{1,0:T(1,128)}', space=vmem, size = 0x9000, scoped, tag = 'internal scratch']
  %s0 = inlined_call_operand.hbm [shape: f32[8,32], index: 0, kind: input, shape index: {}]
  %s1 = inlined_call_operand.hbm [shape: f32[8,32], index: 1, kind: input, shape index: {}]
  %s2 = inlined_call_operand.vmem [shape: f32[8,1], index: 2, kind: output, shape index: {}]
  %s3 = sld [smem:[#allocation0]]
  $region26: #{tpu_custom_call.1} parent=0
    _
  %s5 = ssub.s32 1, %s3
  %s6 = scalar_select 0, %s5, %s3
  $region1: #{tpu_custom_call.1} parent=0
    #allocation2 [shape = 'u8[4096]{0}', space=vmem, size = 0x1000, scoped, tag = 'input window, operand 0, single buffered']
    #allocation3 [shape = 's32[1]{0}', space=sflag, size = 0x4, scoped, tag = 'scoped memory for tpu_custom_call.1']
    #allocation4 [shape = 'u8[4096]{0}', space=vmem, size = 0x1000, scoped, tag = 'input window, operand 1, single buffered']
    #allocation5 [shape = 's32[1]{0}', space=sflag, size = 0x4, scoped, tag = 'scoped memory for tpu_custom_call.1']
    %7 = vsyncpa [#allocation3], 0
    %8 = vsyncpa [#allocation5], 0
    // Predicated region
    $region2: #{tpu_custom_call.1} parent=1 // pred_check
      _
    $region3: #{tpu_custom_call.1} parent=1 // pred_check_branch
      %10 = sbr.rel (0) target = $region5
    $region4: #{tpu_custom_call.1} parent=1 // pred_region
      %12 = vsyncadd [#allocation3], 0
      %s14 = sshll.u32 %s0, 4
      %s15 = int_to_ptr.hbm [resolvable:$true] %s14
      %s16 = sshll.u32 [#allocation2], 4
      %s17 = int_to_ptr.vmem [resolvable:$true] %s16
      %19 = dma.hbm_to_vmem [thread:$0]  %s15, 128, %s17, [#allocation3]
    $region5: #{tpu_custom_call.1} parent=1 // pred_fallthru
      _
    // Predicated region
    $region6: #{tpu_custom_call.1} parent=1 // pred_check
      _
    $region7: #{tpu_custom_call.1} parent=1 // pred_check_branch
      %21 = sbr.rel (0) target = $region9
    $region8: #{tpu_custom_call.1} parent=1 // pred_region
      %23 = vsyncadd [#allocation5], 0
      %s25 = sshll.u32 %s1, 4
      %s26 = int_to_ptr.hbm [resolvable:$true] %s25
      %s27 = sshll.u32 [#allocation4], 4
      %s28 = int_to_ptr.vmem [resolvable:$true] %s27
      %30 = dma.hbm_to_vmem [thread:$0]  %s26, 128, %s28, [#allocation5]
    $region9: #{tpu_custom_call.1} parent=1 // pred_fallthru
      _
    // Predicated region
    $region10: #{tpu_custom_call.1} parent=1 // pred_check
      _
    $region11: #{tpu_custom_call.1} parent=1 // pred_check_branch
      %32 = sbr.rel (0) target = $region13
    $region12: #{tpu_custom_call.1} parent=1 // pred_region
      %34 = dma.done [#allocation3], 128
    $region13: #{tpu_custom_call.1} parent=1 // pred_fallthru
      _
    // Predicated region
    $region14: #{tpu_custom_call.1} parent=1 // pred_check
      _
    $region15: #{tpu_custom_call.1} parent=1 // pred_check_branch
      %36 = sbr.rel (0) target = $region17
    $region16: #{tpu_custom_call.1} parent=1 // pred_region
      %38 = dma.done [#allocation5], 128
    $region17: #{tpu_custom_call.1} parent=1 // pred_fallthru
      _
    %v39 = vld [vmem:[#allocation2] sm:$0xff]
    %v40 = vld [vmem:[#allocation4] sm:$0xff]
    %vm41 = vcmask 261120
    %v42 = vsel %vm41, %v39, -inf
    %43 = vmax.xlane.f32.xlu0 %v42
    %v44 = vpop.xlane.xlu0 %43
    %v45 = vsub.f32 %v39, %v44
    %v46 = vmul.f32 %v45, 1.442695
    %v47 = vpow.pop %v46
    %v48 = vsel %vm41, %v47, 0.0
    %49 = vadd.xlane.f32.xlu0 %v48
    %v50 = vpop.xlane.xlu0 %49
    %v51 = vlog2.pop %v50
    %v52 = vmul.f32 %v51, 0.6931472
    %v53 = vadd.f32 %v44, %v52
    %v54 = vmul.f32 %v40, %v39
    %v55 = vsel %vm41, %v54, 0.0
    %56 = vadd.xlane.f32.xlu0 %v55
    %v57 = vpop.xlane.xlu0 %56
    %v58 = vsel %vm41, %v39, 0.0
    %59 = vadd.xlane.f32.xlu0 %v58
    %v60 = vpop.xlane.xlu0 %59
    %v61 = vsel %vm41, %v40, 0.0
    %62 = vadd.xlane.f32.xlu0 %v61
    %v63 = vpop.xlane.xlu0 %62
    %v64 = vrcp.pop %v63
    %v65 = vmul.f32 %v63, %v64
    %v66 = vsub.f32 1.0, %v65
    %v67 = vmul.f32 %v64, %v66
    %v68 = vadd.f32 %v64, %v67
    %vm69 = vweird.f32 %v63
    %vm70 = vweird.f32 %v64
    %vm71 = vmor %vm69, %vm70
    %v72 = vsel %vm71, %v64, %v68
    %v73 = vand.u32 2147483647, %v63
    %vm74 = vcmp.eq.f32.partialorder %v73, 8.507059e+37
    %v75 = vand.u32 %v63, 2147483648
    %v76 = vor.u32 1.1754944e-38, %v75
    %v77 = vsel %vm74, %v76, %v72
    %v78 = vmul.f32 %v57, %v77
    %v79 = vsub.f32 %v78, %v53
    %v80 = vmul.f32 %v53, 32.0
    %v81 = vsub.f32 %v60, %v80
    %v82 = vmul.f32 %v81, 1e-10
    %v83 = vadd.f32 %v79, %v82
    %v84 = vsub.f32 0.0, %v83
    %vm85 = vcmask 7168
    %86 = vst.msk [vmem:[%s2] sm:$0xff] %vm85, %v84
    // Predicated region
    $region18: #{tpu_custom_call.1} parent=1 // pred_check
      _
    $region19: #{tpu_custom_call.1} parent=1 // pred_check_branch
      %88 = sbr.rel (0) target = $region21
    $region20: #{tpu_custom_call.1} parent=1 // pred_region
      _
    $region21: #{tpu_custom_call.1} parent=1 // pred_fallthru
      _
    // Predicated region
    $region22: #{tpu_custom_call.1} parent=1 // pred_check
      _
    $region23: #{tpu_custom_call.1} parent=1 // pred_check_branch
      %90 = sbr.rel (0) target = $region25
    $region24: #{tpu_custom_call.1} parent=1 // pred_region
      _
    $region25: #{tpu_custom_call.1} parent=1 // pred_fallthru
      _
    %91 = vsyncpa [#allocation3], 1
    %92 = vsyncpa [#allocation5], 1

</llo_original>
